<compile_context>
chip_gen: v6e
topology: v6e:2x2x1
jax: 0.10.0
libtpu: 0.0.40
codegen_flags: <defaults>
</compile_context>

<pallas_src>
import jax
import jax.numpy as jnp
from jax import lax
from jax.experimental import pallas as pl
from jax.experimental.pallas import tpu as pltpu


_CHUNK = 32  # batch rows per inner-loop iteration (multiple of 8 sublanes, fits in vregs)


def _round_up(a: int, b: int) -> int:
    return (a + b - 1) // b * b


def _tpu_vmem_and_cores():
    """Best-effort per-core VMEM capacity and TensorCore count.

    Falls back to v7x-safe defaults (64 MiB, 2 cores); those are merely conservative
    (never unsafe) on v5e / v6e.
    """
    vmem = 64 * 1024 * 1024
    cores = 2
    try:
        info = pltpu.get_tpu_info()
        for name in ("vmem_capacity_bytes", "vmem_bytes", "vmem_capacity"):
            val = getattr(info, name, None)
            if isinstance(val, int) and val > 0:
                vmem = val
                break
        for name in ("num_cores", "core_count", "num_tensorcores", "tensorcores_per_chip"):
            val = getattr(info, name, None)
            if isinstance(val, int) and val > 0:
                cores = val
                break
    except Exception:
        pass
    return vmem, cores


def _pick_batch_tile(n, hw, in_itemsize, out_itemsize, vmem_budget, num_cores):
    """Pick the batch-row tile. Returns (tile_rows, use_chunked_inner_loop)."""
    if n < _CHUNK:
        # Single tiny block whose dims equal the full array dims (always a legal layout).
        return n, False
    # Double-buffered input + output blocks per grid step.
    bytes_per_row = 2 * hw * in_itemsize + 2 * hw * out_itemsize
    max_rows = max(_CHUNK, (vmem_budget // bytes_per_row) // _CHUNK * _CHUNK)
    # tile <= n so only the *last* grid block is ragged (standard clipped-DMA case).
    tile = min(max_rows, (n // _CHUNK) * _CHUNK)
    if num_cores > 1:
        # Keep >= num_cores balanced parallel grid steps (v7x has 2 TensorCores).
        per_core = max(_CHUNK, _round_up(pl.cdiv(n, num_cores), _CHUNK))
        tile = min(tile, per_core)
    return tile, True


def _make_conv_kernel(K, W, HW, chunked):
    def taps(x, w):
        # x: (rows, HW) float32 flattened images; w: list of K*K float32 scalars.
        # out[p] = sum_{ki,kj} w[ki*K+kj] * x[p + ki*W + kj]  (valid p only; roll wrap lands
        # exclusively in flat positions the wrapper crop discards).
        rolled = x
        rows = [w[ki * K] * rolled for ki in range(K)]          # kj == 0 taps
        for kj in range(1, K):
            # Look ahead one more lane: result[i] = x[(i + kj) % HW].
            rolled = pltpu.roll(rolled, shift=HW - 1, axis=1)
            for ki in range(K):
                rows[ki] = rows[ki] + w[ki * K + kj] * rolled
        acc = rows[0]
        for ki in range(1, K):
            # Look ahead ki image rows: result[p] = rows[ki][(p + ki*W) % HW].
            acc = acc + pltpu.roll(rows[ki], shift=HW - ki * W, axis=1)
        return acc

    def kernel(w_ref, x_ref, o_ref):
        # w_ref: (K*K,) f32 in SMEM; x_ref/o_ref: (tile, HW) blocks in VMEM.
        w = [w_ref[i] for i in range(K * K)]                     # hoisted scalar reads

        if not chunked:
            o_ref[...] = taps(x_ref[...].astype(jnp.float32), w).astype(o_ref.dtype)
            return

        n_chunks = x_ref.shape[0] // _CHUNK                      # static (block shape)

        def body(c, carry):
            r0 = pl.multiple_of(c * _CHUNK, _CHUNK)
            xc = x_ref[pl.ds(r0, _CHUNK), :].astype(jnp.float32)
            o_ref[pl.ds(r0, _CHUNK), :] = taps(xc, w).astype(o_ref.dtype)
            return carry

        lax.fori_loop(0, n_chunks, body, 0)

    return kernel


def custom_cnn_forward(x_nchw: jax.Array, custom_kernel: jax.Array) -> jax.Array:
    """Equivalent of CustomCNN.forward: F.conv2d(x, k[None, None]) (stride 1, VALID)."""
    N, C, H, W = x_nchw.shape
    assert C == 1, "CustomCNN uses a (1,1,K,K) conv weight -> single input channel"
    K = custom_kernel.shape[0]
    assert custom_kernel.shape == (K, K)
    assert H >= K and W >= K
    OH, OW = H - K + 1, W - K + 1
    HW = H * W
    assert HW % 128 == 0, "flattened image H*W must be a multiple of 128 lanes"

    in_itemsize = jnp.dtype(x_nchw.dtype).itemsize
    out_itemsize = in_itemsize

    vmem_cap, num_cores = _tpu_vmem_and_cores()
    # Leave headroom for Mosaic internal scratch; cap at 112 MiB on 128-MiB parts,
    # 48 MiB on the 64-MiB v7x part.
    vmem_limit = max(32 * 2**20, min(int(vmem_cap) - 16 * 2**20, 112 * 2**20))
    tile, chunked = _pick_batch_tile(
        N, HW, in_itemsize, out_itemsize, int(0.85 * vmem_limit), num_cores)

    # Free metadata reshapes (no HBM traffic): NCHW with C==1 -> (N, H*W); weights -> f32 flat.
    x_flat = x_nchw.reshape(N, HW)
    w_flat = custom_kernel.astype(jnp.float32).reshape(K * K)

    out_flat = pl.pallas_call(
        _make_conv_kernel(K, W, HW, chunked),
        out_shape=jax.ShapeDtypeStruct((N, HW), x_nchw.dtype),
        grid_spec=pltpu.PrefetchScalarGridSpec(
            num_scalar_prefetch=0,
            grid=(pl.cdiv(N, tile),),
            in_specs=[
                pl.BlockSpec(memory_space=pltpu.MemorySpace.SMEM),   # (K*K,) weight scalars
                pl.BlockSpec((tile, HW), lambda i: (i, 0)),          # batch tile of flat images
            ],
            out_specs=pl.BlockSpec((tile, HW), lambda i: (i, 0)),
        ),
        compiler_params=pltpu.CompilerParams(
            dimension_semantics=("parallel",),
            vmem_limit_bytes=vmem_limit,
        ),
        cost_estimate=pl.CostEstimate(
            flops=2 * K * K * N * OH * OW,
            transcendentals=0,
            bytes_accessed=N * HW * (in_itemsize + out_itemsize) + K * K * 4,
        ),
    )(w_flat, x_flat)

    # Crop the valid (OH, OW) window; the only non-free wrapper op (replaces the old
    # full-tensor transposes + pad).
    return out_flat.reshape(N, H, W)[:, :OH, :OW].reshape(N, 1, OH, OW)


if __name__ == "__main__":
    key = jax.random.PRNGKey(0)
    kx, kw, kx2 = jax.random.split(key, 3)

    # Shapes consistent with the module: N=2, C=1, 16x16 image, 3x3 custom kernel.
    N, C, H, W, K = 2, 1, 16, 16, 3
    x = jax.random.normal(kx, (N, C, H, W), dtype=jnp.float32)
    custom_kernel = jax.random.normal(kw, (K, K), dtype=jnp.float32)

    fwd = jax.jit(custom_cnn_forward)

    def ref_conv(xx):
        return lax.conv_general_dilated(
            xx, custom_kernel[None, None, :, :],
            window_strides=(1, 1), padding="VALID",
            dimension_numbers=("NCHW", "OIHW", "NCHW"))

    y = jax.block_until_ready(fwd(x, custom_kernel))
    assert y.shape == (N, 1, H - K + 1, W - K + 1)
    assert jnp.allclose(y, ref_conv(x), atol=1e-4, rtol=1e-4)

    # Multi-block + ragged batch path (batch not a multiple of the tile; exercises the
    # chunked inner loop and the clipped last block).
    N2 = 300
    x2 = jax.random.normal(kx2, (N2, C, H, W), dtype=jnp.float32)
    y2 = jax.block_until_ready(fwd(x2, custom_kernel))
    assert y2.shape == (N2, 1, H - K + 1, W - K + 1)
    assert jnp.allclose(y2, ref_conv(x2), atol=1e-4, rtol=1e-4)

    print("KERNEL_OK")
</pallas_src>

<mosaic_0001>
module attributes {stable_mosaic.version = 11 : i64} {
  func.func @kernel(%arg0: i32, %arg1: memref<9xf32, #tpu.memory_space<smem>>, %arg2: memref<2x256xf32, #tpu.memory_space<vmem>>, %arg3: memref<2x256xf32, #tpu.memory_space<vmem>>) attributes {dimension_semantics = [#tpu.dimension_semantics<parallel>], iteration_bounds = array<i64: 1>, scalar_prefetch = 0 : i64, scratch_operands = 0 : i64, tpu.core_type = #tpu.core_type<tc>, window_params = [{transform_indices = @transform_0, window_bounds = array<i64: 9>}, {transform_indices = @transform_1, window_bounds = array<i64: 2, 256>}, {transform_indices = @transform_2, window_bounds = array<i64: 2, 256>}]} {
    %c0 = arith.constant 0 : index
    %0 = memref.load %arg1[%c0] : memref<9xf32, #tpu.memory_space<smem>>
    %c1 = arith.constant 1 : index
    %1 = memref.load %arg1[%c1] : memref<9xf32, #tpu.memory_space<smem>>
    %c2 = arith.constant 2 : index
    %2 = memref.load %arg1[%c2] : memref<9xf32, #tpu.memory_space<smem>>
    %c3 = arith.constant 3 : index
    %3 = memref.load %arg1[%c3] : memref<9xf32, #tpu.memory_space<smem>>
    %c4 = arith.constant 4 : index
    %4 = memref.load %arg1[%c4] : memref<9xf32, #tpu.memory_space<smem>>
    %c5 = arith.constant 5 : index
    %5 = memref.load %arg1[%c5] : memref<9xf32, #tpu.memory_space<smem>>
    %c6 = arith.constant 6 : index
    %6 = memref.load %arg1[%c6] : memref<9xf32, #tpu.memory_space<smem>>
    %c7 = arith.constant 7 : index
    %7 = memref.load %arg1[%c7] : memref<9xf32, #tpu.memory_space<smem>>
    %c8 = arith.constant 8 : index
    %8 = memref.load %arg1[%c8] : memref<9xf32, #tpu.memory_space<smem>>
    %c0_0 = arith.constant 0 : index
    %c0_1 = arith.constant 0 : index
    %9 = vector.load %arg2[%c0_0, %c0_1] : memref<2x256xf32, #tpu.memory_space<vmem>>, vector<2x256xf32>
    %10 = vector.broadcast %0 : f32 to vector<2x256xf32>
    %11 = arith.mulf %10, %9 : vector<2x256xf32>
    %12 = vector.broadcast %3 : f32 to vector<2x256xf32>
    %13 = arith.mulf %12, %9 : vector<2x256xf32>
    %14 = vector.broadcast %6 : f32 to vector<2x256xf32>
    %15 = arith.mulf %14, %9 : vector<2x256xf32>
    %c255_i32 = arith.constant 255 : i32
    %16 = tpu.dynamic_rotate %9 by %c255_i32 dim 1 : vector<2x256xf32>, i32 -> vector<2x256xf32>
    %17 = vector.broadcast %1 : f32 to vector<2x256xf32>
    %18 = arith.mulf %17, %16 : vector<2x256xf32>
    %19 = arith.addf %11, %18 : vector<2x256xf32>
    %20 = vector.broadcast %4 : f32 to vector<2x256xf32>
    %21 = arith.mulf %20, %16 : vector<2x256xf32>
    %22 = arith.addf %13, %21 : vector<2x256xf32>
    %23 = vector.broadcast %7 : f32 to vector<2x256xf32>
    %24 = arith.mulf %23, %16 : vector<2x256xf32>
    %25 = arith.addf %15, %24 : vector<2x256xf32>
    %c255_i32_2 = arith.constant 255 : i32
    %26 = tpu.dynamic_rotate %16 by %c255_i32_2 dim 1 : vector<2x256xf32>, i32 -> vector<2x256xf32>
    %27 = vector.broadcast %2 : f32 to vector<2x256xf32>
    %28 = arith.mulf %27, %26 : vector<2x256xf32>
    %29 = arith.addf %19, %28 : vector<2x256xf32>
    %30 = vector.broadcast %5 : f32 to vector<2x256xf32>
    %31 = arith.mulf %30, %26 : vector<2x256xf32>
    %32 = arith.addf %22, %31 : vector<2x256xf32>
    %33 = vector.broadcast %8 : f32 to vector<2x256xf32>
    %34 = arith.mulf %33, %26 : vector<2x256xf32>
    %35 = arith.addf %25, %34 : vector<2x256xf32>
    %c240_i32 = arith.constant 240 : i32
    %36 = tpu.dynamic_rotate %32 by %c240_i32 dim 1 : vector<2x256xf32>, i32 -> vector<2x256xf32>
    %37 = arith.addf %29, %36 : vector<2x256xf32>
    %c224_i32 = arith.constant 224 : i32
    %38 = tpu.dynamic_rotate %35 by %c224_i32 dim 1 : vector<2x256xf32>, i32 -> vector<2x256xf32>
    %39 = arith.addf %37, %38 : vector<2x256xf32>
    %c0_3 = arith.constant 0 : index
    %c0_4 = arith.constant 0 : index
    %40 = vector.load %arg3[%c0_3, %c0_4] : memref<2x256xf32, #tpu.memory_space<vmem>>, vector<2x256xf32>
    tpu.vector_store %arg3[%c0_3, %c0_4], %39 {strides = array<i32>} : memref<2x256xf32, #tpu.memory_space<vmem>>, vector<2x256xf32>,
    return
  }
  func.func @transform_0(%arg0: i32) -> i32 {
    %c0_i32 = arith.constant 0 : i32
    %c0_i32_0 = arith.constant 0 : i32
    return %c0_i32 : i32
  }
  func.func @transform_1(%arg0: i32) -> (i32, i32) {
    %c0_i32 = arith.constant 0 : i32
    %c0_i32_0 = arith.constant 0 : i32
    return %arg0, %c0_i32 : i32, i32
  }
  func.func @transform_2(%arg0: i32) -> (i32, i32) {
    %c0_i32 = arith.constant 0 : i32
    %c0_i32_0 = arith.constant 0 : i32
    return %arg0, %c0_i32 : i32, i32
  }
}

</mosaic_0001>

<llo_original>
// kernel: custom_cnn_forward.1
$region0: #{custom_cnn_forward.1}
  #allocation0 [shape = 'u32[]', space=smem, size = 0x4, offset = 0x4, fixed_abs, tag = 'smem constant byte address 0x4 - core index']
  #allocation1 [shape = 'u32[144,128]{1,0:T(1,128)}', space=vmem, size = 0x12000, scoped, tag = 'internal scratch']
  %s0 = inlined_call_operand.vmem [shape: f32[9], index: 0, kind: input, shape index: {}]
  %s1 = inlined_call_operand.vmem [shape: f32[2,256], index: 1, kind: input, shape index: {}]
  %s2 = inlined_call_operand.vmem [shape: f32[2,256], index: 2, kind: output, shape index: {}]
  %s3 = sld [smem:[#allocation0]]
  $region22: #{custom_cnn_forward.1} parent=0
    _
  %s5 = ssub.s32 1, %s3
  %s6 = scalar_select 0, %s5, %s3
  $region1: #{custom_cnn_forward.1} parent=0
    #allocation2 [shape = 'u8[512]{0}', space=smem, size = 0x200, scoped, tag = 'input window, operand 0, single buffered']
    #allocation3 [shape = 's32[1]{0}', space=sflag, size = 0x4, scoped, tag = 'scoped memory for custom_cnn_forward.1']
    %7 = vsyncpa [#allocation3], 0
    // Predicated region
    $region2: #{custom_cnn_forward.1} parent=1 // pred_check
      _
    $region3: #{custom_cnn_forward.1} parent=1 // pred_check_branch
      %9 = sbr.rel (0) target = $region5
    $region4: #{custom_cnn_forward.1} parent=1 // pred_region
      %s11 = ssub.s32 16, 16
      %12 = vsyncadd [#allocation3], %s11
      %s14 = sshll.u32 %s0, 4
      %s15 = int_to_ptr.vmem [resolvable:$true] %s14
      %17 = dma.vmem_to_smem %s15, 16, [#allocation2], [#allocation3]
    $region5: #{custom_cnn_forward.1} parent=1 // pred_fallthru
      _
    // Predicated region
    $region6: #{custom_cnn_forward.1} parent=1 // pred_check
      _
    $region7: #{custom_cnn_forward.1} parent=1 // pred_check_branch
      %19 = sbr.rel (0) target = $region9
    $region8: #{custom_cnn_forward.1} parent=1 // pred_region
      _
    $region9: #{custom_cnn_forward.1} parent=1 // pred_fallthru
      _
    // Predicated region
    $region10: #{custom_cnn_forward.1} parent=1 // pred_check
      _
    $region11: #{custom_cnn_forward.1} parent=1 // pred_check_branch
      %21 = sbr.rel (0) target = $region13
    $region12: #{custom_cnn_forward.1} parent=1 // pred_region
      %22 = dma.done [#allocation3], 16
    $region13: #{custom_cnn_forward.1} parent=1 // pred_fallthru
      _
    %23 = sfence
    %s24 = sld [smem:[#allocation2]]
    %s25 = sld [smem:[#allocation2 + $0x1]]
    %s26 = sld [smem:[#allocation2 + $0x2]]
    %s27 = sld [smem:[#allocation2 + $0x3]]
    %s28 = sld [smem:[#allocation2 + $0x4]]
    %s29 = sld [smem:[#allocation2 + $0x5]]
    %s30 = sld [smem:[#allocation2 + $0x6]]
    %s31 = sld [smem:[#allocation2 + $0x7]]
    %s32 = sld [smem:[#allocation2 + $0x8]]
    %v33 = vld [vmem:[%s1] sm:$0xf]
    %v34 = vstv %s24
    %v35 = vmul.f32 %v34, %v33
    %v36 = vstv %s27
    %v37 = vmul.f32 %v36, %v33
    %v38 = vstv %s30
    %v39 = vmul.f32 %v38, %v33
    %v42 = vunpack.c.l.s4 1983009808
    %v43 = vunpack.c.0.s8 %v42
    %v44 = vlaneseq
    %v45 = vshrl.u32 %v44, 7
    %v46 = vsub.s32 %v43, %v45
    %v47 = vrot.slane %v33, %v46
    %v48 = vcombine.high %v47, %v47
    %51 = vrot.lane.b32.xlu0 %v47, 127
    %v52 = vpop.permute.xlu0 %51
    %53 = vrot.lane.b32.xlu0 %v48, 127
    %v54 = vpop.permute.xlu0 %53
    %v55 = vlaneseq
    %v56 = vand.u32 %v55, 127
    %vm57 = vcmp.lt.s32.totalorder %v56, 127
    %v58 = vsel %vm57, %v52, %v54
    %v59 = vsel %vm57, %v54, %v52
    %v60 = vstv %s25
    %v61 = vmul.f32 %v60, %v58
    %v62 = vmul.f32 %v60, %v59
    %v65 = vcombine.low %v61, %v62
    %v67 = vunpack.c.l.s4 1983009808
    %v68 = vunpack.c.0.s8 %v67
    %v69 = vlaneseq
    %v70 = vshrl.u32 %v69, 7
    %v71 = vsub.s32 %v68, %v70
    %v72 = vrot.slane %v65, %v71
    %v74 = vadd.f32 %v35, %v72
    %v75 = vstv %s28
    %v76 = vmul.f32 %v75, %v58
    %v77 = vmul.f32 %v75, %v59
    %v80 = vcombine.low %v76, %v77
    %v82 = vunpack.c.l.s4 1983009808
    %v83 = vunpack.c.0.s8 %v82
    %v84 = vlaneseq
    %v85 = vshrl.u32 %v84, 7
    %v86 = vsub.s32 %v83, %v85
    %v87 = vrot.slane %v80, %v86
    %v89 = vadd.f32 %v37, %v87
    %v90 = vstv %s31
    %v91 = vmul.f32 %v90, %v58
    %v92 = vmul.f32 %v90, %v59
    %v95 = vcombine.low %v91, %v92
    %v97 = vunpack.c.l.s4 1983009808
    %v98 = vunpack.c.0.s8 %v97
    %v99 = vlaneseq
    %v100 = vshrl.u32 %v99, 7
    %v101 = vsub.s32 %v98, %v100
    %v102 = vrot.slane %v95, %v101
    %v104 = vadd.f32 %v39, %v102
    %105 = vrot.lane.b32.xlu0 %v58, 127
    %v106 = vpop.permute.xlu0 %105
    %107 = vrot.lane.b32.xlu0 %v59, 127
    %v108 = vpop.permute.xlu0 %107
    %v109 = vsel %vm57, %v106, %v108
    %v110 = vsel %vm57, %v108, %v106
    %v111 = vstv %s26
    %v112 = vmul.f32 %v111, %v109
    %v113 = vmul.f32 %v111, %v110
    %v116 = vcombine.low %v112, %v113
    %v118 = vunpack.c.l.s4 1983009808
    %v119 = vunpack.c.0.s8 %v118
    %v120 = vlaneseq
    %v121 = vshrl.u32 %v120, 7
    %v122 = vsub.s32 %v119, %v121
    %v123 = vrot.slane %v116, %v122
    %v125 = vadd.f32 %v74, %v123
    %v126 = vstv %s29
    %v127 = vmul.f32 %v126, %v109
    %v128 = vmul.f32 %v126, %v110
    %v131 = vcombine.low %v127, %v128
    %v133 = vunpack.c.l.s4 1983009808
    %v134 = vunpack.c.0.s8 %v133
    %v135 = vlaneseq
    %v136 = vshrl.u32 %v135, 7
    %v137 = vsub.s32 %v134, %v136
    %v138 = vrot.slane %v131, %v137
    %v140 = vadd.f32 %v89, %v138
    %v141 = vstv %s32
    %v142 = vmul.f32 %v141, %v109
    %v143 = vmul.f32 %v141, %v110
    %v146 = vcombine.low %v142, %v143
    %v148 = vunpack.c.l.s4 1983009808
    %v149 = vunpack.c.0.s8 %v148
    %v150 = vlaneseq
    %v151 = vshrl.u32 %v150, 7
    %v152 = vsub.s32 %v149, %v151
    %v153 = vrot.slane %v146, %v152
    %v155 = vadd.f32 %v104, %v153
    %v158 = vunpack.c.l.s4 1983009808
    %v159 = vunpack.c.0.s8 %v158
    %v160 = vlaneseq
    %v161 = vshrl.u32 %v160, 7
    %v162 = vsub.s32 %v159, %v161
    %v163 = vrot.slane %v140, %v162
    %v164 = vcombine.high %v163, %v163
    %167 = vrot.lane.b32.xlu0 %v163, 112
    %v168 = vpop.permute.xlu0 %167
    %169 = vrot.lane.b32.xlu0 %v164, 112
    %v170 = vpop.permute.xlu0 %169
    %vm171 = vcmp.lt.s32.totalorder %v56, 112
    %v172 = vsel %vm171, %v168, %v170
    %v173 = vsel %vm171, %v170, %v168
    %v176 = vcombine.low %v172, %v173
    %v178 = vunpack.c.l.s4 1983009808
    %v179 = vunpack.c.0.s8 %v178
    %v180 = vlaneseq
    %v181 = vshrl.u32 %v180, 7
    %v182 = vsub.s32 %v179, %v181
    %v183 = vrot.slane %v176, %v182
    %v185 = vadd.f32 %v125, %v183
    %v188 = vunpack.c.l.s4 1983009808
    %v189 = vunpack.c.0.s8 %v188
    %v190 = vlaneseq
    %v191 = vshrl.u32 %v190, 7
    %v192 = vsub.s32 %v189, %v191
    %v193 = vrot.slane %v155, %v192
    %v194 = vcombine.high %v193, %v193
    %197 = vrot.lane.b32.xlu0 %v193, 96
    %v198 = vpop.permute.xlu0 %197
    %199 = vrot.lane.b32.xlu0 %v194, 96
    %v200 = vpop.permute.xlu0 %199
    %vm201 = vcmp.lt.s32.totalorder %v56, 96
    %v202 = vsel %vm201, %v198, %v200
    %v203 = vsel %vm201, %v200, %v198
    %v206 = vcombine.low %v202, %v203
    %v208 = vunpack.c.l.s4 1983009808
    %v209 = vunpack.c.0.s8 %v208
    %v210 = vlaneseq
    %v211 = vshrl.u32 %v210, 7
    %v212 = vsub.s32 %v209, %v211
    %v213 = vrot.slane %v206, %v212
    %v215 = vadd.f32 %v185, %v213
    %216 = vst [vmem:[%s2] sm:$0xf] %v215
    // Predicated region
    $region14: #{custom_cnn_forward.1} parent=1 // pred_check
      _
    $region15: #{custom_cnn_forward.1} parent=1 // pred_check_branch
      %218 = sbr.rel (0) target = $region17
    $region16: #{custom_cnn_forward.1} parent=1 // pred_region
      _
    $region17: #{custom_cnn_forward.1} parent=1 // pred_fallthru
      _
    // Predicated region
    $region18: #{custom_cnn_forward.1} parent=1 // pred_check
      _
    $region19: #{custom_cnn_forward.1} parent=1 // pred_check_branch
      %220 = sbr.rel (0) target = $region21
    $region20: #{custom_cnn_forward.1} parent=1 // pred_region
      _
    $region21: #{custom_cnn_forward.1} parent=1 // pred_fallthru
      _
    %221 = vsyncpa [#allocation3], 1

</llo_original>
